<compile_context>
chip_gen: v7x
topology: tpu7x:2x2x1
jax: 0.10.0
libtpu: 0.0.40
codegen_flags: <defaults>
</compile_context>

<pallas_src>
import functools

import jax
import jax.numpy as jnp
import numpy as np
from jax.experimental import pallas as pl
from jax.experimental.pallas import tpu as pltpu

# Architecture constants hard-coded in the PyTorch module.
C = 56                  # deconv in/out channels
L_LIN = 838             # Linear out features == deconv input length
K = 3                   # deconv kernel size
L_OUT = L_LIN + K - 1   # 840  (stride=1, padding=0 ConvTranspose1d)
LP = 896                # lane-padded length (multiple of 128, >= L_OUT)


@functools.lru_cache(maxsize=None)
def _roll_is_jnp_roll() -> bool:
    """Empirically pin pltpu.roll's rotation direction once (tiny cached kernel).

    The deconv needs h shifted toward HIGHER lane indices (out[t] = in[t-k], i.e.
    jnp.roll with a positive shift).  If the primitive rotates the other way we use
    shift = LP - k, which is the identical circular rotation.
    """
    def probe(x_ref, o_ref):
        o_ref[...] = pltpu.roll(x_ref[...], shift=1, axis=1)

    x = jax.lax.broadcasted_iota(jnp.float32, (8, 128), 1)
    y = pl.pallas_call(probe, out_shape=jax.ShapeDtypeStruct((8, 128), jnp.float32))(x)
    return bool(y[0, 1] == 0.0)


def _decoder_kernel(x_ref, wl_ref, bl_ref, wd_ref, bd_ref, o_ref, *, shift1, shift2):
    # x_ref:  (TB, C, E)   matmul-dtype activations (bf16 on TPU, f32 elsewhere)
    # wl_ref: (E, LP)      linear weight^T, zero-padded for lanes >= L_LIN
    # bl_ref: (1, LP)      f32 linear bias, zero-padded
    # wd_ref: (C, K*C)     combined deconv weight, W[o, k*C + i] = torch_w[i, o, k]
    # bd_ref: (C, 1)       f32 deconv bias
    # o_ref:  (TB, C, LP)  output; lanes >= L_OUT are written as exact zeros
    tb = x_ref.shape[0]
    E = x_ref.shape[2]
    md = wd_ref.dtype

    # ---- Linear: fold batch into M so the MXU sees one (TB*C, E) @ (E, LP) ----
    x2 = x_ref[...].reshape(tb * C, E)                       # 56 rows/batch -> 8-aligned
    h = jnp.dot(x2, wl_ref[...], preferred_element_type=jnp.float32) + bl_ref[...]
    h0 = h.astype(md)                                        # (TB*C, LP)

    # ---- Pre-shift for the transposed conv: out[t] = sum_k W_k @ h[t-k] ----
    # Lanes >= L_LIN of h are exactly zero (wl/bl are zero-padded), so the circular
    # wrap of the roll only moves zeros into lanes 0..k-1.
    h1 = pltpu.roll(h0, shift=shift1, axis=1)                # h shifted by +1 lane
    h2 = pltpu.roll(h0, shift=shift2, axis=1)                # h shifted by +2 lanes

    w2 = wd_ref[...]                                         # (C, 3C), stays resident
    bd = bd_ref[...]                                         # (C, 1) f32
    valid = jax.lax.broadcasted_iota(jnp.int32, (C, LP), 1) < L_OUT

    # One (C, 3C) @ (3C, LP) MXU matmul per batch element: the K=3 taps are fused
    # into the 168-row contraction, accumulation happens on the MXU, and the result
    # lands straight in the output tile (no (TB, 3C, LP) intermediate, no weight
    # broadcast across the batch).
    for b in range(tb):                                      # static unroll
        r0, r1 = b * C, (b + 1) * C                          # multiples of 56 (8-aligned)
        hs = jnp.concatenate([h0[r0:r1], h1[r0:r1], h2[r0:r1]], axis=0)   # (3C, LP)
        yb = jnp.dot(w2, hs, preferred_element_type=jnp.float32) + bd     # (C, LP) f32
        yb = jnp.where(valid, jnp.maximum(yb, 0.0), 0.0)                  # ReLU + zero pad lanes
        o_ref[b] = yb.astype(o_ref.dtype)


def cnn_decoder(x, w_lin, b_lin, w_dc, b_dc, *, tb=8, out_dtype=jnp.bfloat16,
                operand_dtype=None, trim_output=False,
                vmem_limit_bytes=32 * 1024 * 1024):
    """Pallas CNN_Decoder forward.

    x: (B, C, E); w_lin: (838, E); b_lin: (838,); w_dc: (C, C, K) (PyTorch
    ConvTranspose1d layout); b_dc: (C,).

    Returns (B, C, 896) by default: the valid output is [..., :840] and the padded
    lanes are exact zeros, so consumers can slice lazily and we avoid a full HBM
    read+write copy after the kernel.  Pass trim_output=True for the exact PyTorch
    shape (B, C, 840).

    tb = batch elements per grid step (linear matmul M = tb*56 MXU rows).  tb=8
    fits the 32 MiB VMEM budget on every generation; on v5e/v6e (128 MiB VMEM)
    tb=16-32 with vmem_limit_bytes up to 64 MiB amortises per-step overhead
    further.  For small B, tb shrinks so the grid has >= 2 steps (v7x: 2 TCs)
    instead of padding the batch with dead rows.
    """
    B, c_in, E = x.shape
    assert c_in == C, f"expected {C} channels, got {c_in}"
    if operand_dtype is None:
        # bf16 matmul operands (f32 accumulate) on the TPU MXU; f32 elsewhere
        # (CPU interpret mode has no bf16 x bf16 -> f32 dot).
        operand_dtype = jnp.bfloat16 if jax.default_backend() == "tpu" else jnp.float32
    md = jnp.dtype(operand_dtype)

    tb = max(1, min(tb, B))
    if B >= 2 and B // tb < 2:      # keep >= 2 grid steps for v7x's two TensorCores
        tb = max(1, B // 2)
    n_steps = pl.cdiv(B, tb)
    B_pad = n_steps * tb
    if B_pad != B:
        x = jnp.pad(x, ((0, B_pad - B), (0, 0), (0, 0)))

    xm = x.astype(md)                                                        # (B_pad, C, E)
    wl_t = jnp.pad(w_lin.T, ((0, 0), (0, LP - L_LIN))).astype(md)            # (E, LP)
    bl = jnp.pad(b_lin, (0, LP - L_LIN)).reshape(1, LP).astype(jnp.float32)  # (1, LP)
    # Combined deconv weight: W2[o, k*C + i] = torch_w[i, o, k]  -> (C, 3C)
    w2 = jnp.concatenate([w_dc[:, :, k].T for k in range(K)], axis=1).astype(md)
    bd = b_dc.reshape(C, 1).astype(jnp.float32)                              # (C, 1)

    # jnp.roll-style (+k) lane shifts, adjusted to the primitive's direction.
    if _roll_is_jnp_roll():
        shift1, shift2 = 1, 2
    else:
        shift1, shift2 = LP - 1, LP - 2

    out_itemsize = jnp.dtype(out_dtype).itemsize
    flops = 2 * B_pad * C * E * LP + 2 * B_pad * C * (K * C) * LP
    bytes_accessed = int(xm.size * md.itemsize + wl_t.size * md.itemsize
                         + w2.size * md.itemsize + bl.size * 4 + bd.size * 4
                         + B_pad * C * LP * out_itemsize)

    out = pl.pallas_call(
        functools.partial(_decoder_kernel, shift1=shift1, shift2=shift2),
        out_shape=jax.ShapeDtypeStruct((B_pad, C, LP), out_dtype),
        grid_spec=pltpu.PrefetchScalarGridSpec(
            num_scalar_prefetch=0,
            grid=(n_steps,),
            in_specs=[
                pl.BlockSpec((tb, C, E), lambda b: (b, 0, 0)),
                pl.BlockSpec((E, LP), lambda b: (0, 0)),       # grid-constant operands:
                pl.BlockSpec((1, LP), lambda b: (0, 0)),       # fetched once (constant
                pl.BlockSpec((C, K * C), lambda b: (0, 0)),    # index_map), never re-DMA'd
                pl.BlockSpec((C, 1), lambda b: (0, 0)),
            ],
            out_specs=pl.BlockSpec((tb, C, LP), lambda b: (b, 0, 0)),
        ),
        compiler_params=pltpu.CompilerParams(
            dimension_semantics=("parallel",),
            vmem_limit_bytes=vmem_limit_bytes),
        cost_estimate=pl.CostEstimate(
            flops=flops, transcendentals=0, bytes_accessed=bytes_accessed),
    )(xm, wl_t, bl, w2, bd)

    if B_pad != B:
        out = out[:B]              # only pay this copy when batch padding was added
    if trim_output:
        out = out[:, :, :L_OUT]    # exact PyTorch shape; otherwise slice at the consumer
    return out


def cnn_decoder_ref(x, w_lin, b_lin, w_dc, b_dc):
    """Pure-JAX f32 reference matching the PyTorch forward."""
    h = jnp.einsum("bce,fe->bcf", x.astype(jnp.float32),
                   w_lin.astype(jnp.float32)) + b_lin.astype(jnp.float32)
    y = jnp.zeros((x.shape[0], C, L_OUT), jnp.float32)
    for k in range(K):
        y = y.at[:, :, k:k + L_LIN].add(
            jnp.einsum("bil,io->bol", h, w_dc[:, :, k].astype(jnp.float32)))
    y = y + b_dc[None, :, None]
    return jnp.maximum(y, 0.0)


if __name__ == "__main__":
    B = 2
    E = 256   # small stand-in for transformer_emb_size=1024

    key = jax.random.PRNGKey(0)
    k1, k2, k3, k4, k5 = jax.random.split(key, 5)
    x = jax.random.normal(k1, (B, C, E), jnp.float32)
    # Deterministic synthetic parameters (shapes from the module __init__).
    w_lin = jax.random.normal(k2, (L_LIN, E), jnp.float32) * (1.0 / E ** 0.5)
    b_lin = jax.random.normal(k3, (L_LIN,), jnp.float32) * 0.01
    w_dc = jax.random.normal(k4, (C, C, K), jnp.float32) * (1.0 / (C * K) ** 0.5)
    b_dc = jax.random.normal(k5, (C,), jnp.float32) * 0.01

    out = cnn_decoder(x, w_lin, b_lin, w_dc, b_dc)
    out = jax.block_until_ready(out)
    assert out.shape == (B, C, LP)
    # Padded lanes are exact zeros, so slicing at the consumer is safe.
    assert float(jnp.max(jnp.abs(out[:, :, L_OUT:]))) == 0.0

    ref = cnn_decoder_ref(x, w_lin, b_lin, w_dc, b_dc)
    got = np.asarray(out[:, :, :L_OUT].astype(jnp.float32))
    np.testing.assert_allclose(got, np.asarray(ref), atol=2e-2, rtol=2e-2)
    print("KERNEL_OK")
</pallas_src>

<mosaic_0001>
module attributes {stable_mosaic.version = 11 : i64} {
  func.func @probe(%arg0: memref<8x128xf32, #tpu.memory_space<vmem>>, %arg1: memref<8x128xf32, #tpu.memory_space<vmem>>) attributes {dimension_semantics = [], scalar_prefetch = 0 : i64, scratch_operands = 0 : i64, tpu.core_type = #tpu.core_type<tc>} {
    %c0 = arith.constant 0 : index
    %c0_0 = arith.constant 0 : index
    %0 = vector.load %arg0[%c0, %c0_0] : memref<8x128xf32, #tpu.memory_space<vmem>>, vector<8x128xf32>
    %c1_i32 = arith.constant 1 : i32
    %1 = tpu.dynamic_rotate %0 by %c1_i32 dim 1 : vector<8x128xf32>, i32 -> vector<8x128xf32>
    %c0_1 = arith.constant 0 : index
    %c0_2 = arith.constant 0 : index
    %2 = vector.load %arg1[%c0_1, %c0_2] : memref<8x128xf32, #tpu.memory_space<vmem>>, vector<8x128xf32>
    tpu.vector_store %arg1[%c0_1, %c0_2], %1 {strides = array<i32>} : memref<8x128xf32, #tpu.memory_space<vmem>>, vector<8x128xf32>,
    return
  }
}

</mosaic_0001>

<llo_original>
// kernel: tpu_custom_call.1
$region0: #{tpu_custom_call.1}
  #allocation0 [shape = 'u32[]', space=smem, size = 0x4, offset = 0x4, fixed_abs, tag = 'smem constant byte address 0x4 - core index']
  #allocation1 [shape = 'u32[144,128]{1,0:T(1,128)}', space=vmem, size = 0x12000, scoped, tag = 'internal scratch']
  %s0 = inlined_call_operand.hbm [shape: f32[8,128], index: 0, kind: input, shape index: {}]
  %s1 = inlined_call_operand.hbm [shape: f32[8,128], index: 1, kind: output, shape index: {}]
  %s2 = sld [smem:[#allocation0]]
  $region18: #{tpu_custom_call.1} parent=0
    _
  %s4 = ssub.s32 1, %s2
  %s5 = scalar_select 0, %s4, %s2
  $region1: #{tpu_custom_call.1} parent=0
    #allocation2 [shape = 'u8[4096]{0}', space=vmem, size = 0x1000, scoped, tag = 'input window, operand 0, single buffered']
    #allocation3 [shape = 's32[1]{0}', space=sflag, size = 0x4, scoped, tag = 'scoped memory for tpu_custom_call.1']
    #allocation4 [shape = 's32[1]{0}', space=sflag, size = 0x4, scoped, tag = 'scoped memory for tpu_custom_call.1']
    #allocation5 [shape = 'u8[4096]{0}', space=vmem, size = 0x1000, scoped, tag = 'output window, operand 0, single buffered']
    %6 = vsyncpa [#allocation3], 0
    %7 = vsyncpa [#allocation4], 0
    // Predicated region
    $region2: #{tpu_custom_call.1} parent=1 // pred_check
      _
    $region3: #{tpu_custom_call.1} parent=1 // pred_check_branch
      %9 = sbr.rel (0) target = $region5
    $region4: #{tpu_custom_call.1} parent=1 // pred_region
      %s11 = ssub.s32 128, 128
      %12 = vsyncadd [#allocation3], %s11
      %s14 = sshll.u32 [#allocation2], 4
      %s15 = int_to_ptr.vmem [resolvable:$true] %s14
      %17 = dma.hbm_to_vmem [thread:$0]  %s0, 128, %s15, [#allocation3]
    $region5: #{tpu_custom_call.1} parent=1 // pred_fallthru
      _
    // Predicated region
    $region6: #{tpu_custom_call.1} parent=1 // pred_check
      _
    $region7: #{tpu_custom_call.1} parent=1 // pred_check_branch
      %19 = sbr.rel (0) target = $region9
    $region8: #{tpu_custom_call.1} parent=1 // pred_region
      %20 = dma.done [#allocation3], 128
    $region9: #{tpu_custom_call.1} parent=1 // pred_fallthru
      _
    %v21 = vld [vmem:[#allocation2] sm:$0xff]
    %22 = vrot.lane.b32.xlu0 %v21, 1
    %v23 = vpop.permute.xlu0 %22
    %24 = vst [vmem:[#allocation5] sm:$0xff] %v23
    // Predicated region
    $region10: #{tpu_custom_call.1} parent=1 // pred_check
      _
    $region11: #{tpu_custom_call.1} parent=1 // pred_check_branch
      %26 = sbr.rel (0) target = $region13
    $region12: #{tpu_custom_call.1} parent=1 // pred_region
      %s28 = ssub.s32 128, 128
      %29 = vsyncadd [#allocation4], %s28
      %s31 = sshll.u32 [#allocation5], 4
      %s32 = int_to_ptr.vmem [resolvable:$true] %s31
      %34 = dma.vmem_to_hbm [thread:$0]  %s32, 128, %s1, [#allocation4]
    $region13: #{tpu_custom_call.1} parent=1 // pred_fallthru
      _
    // Predicated region
    $region14: #{tpu_custom_call.1} parent=1 // pred_check
      _
    $region15: #{tpu_custom_call.1} parent=1 // pred_check_branch
      %36 = sbr.rel (0) target = $region17
    $region16: #{tpu_custom_call.1} parent=1 // pred_region
      %37 = dma.done [#allocation4], 128
    $region17: #{tpu_custom_call.1} parent=1 // pred_fallthru
      _
    %38 = vsyncpa [#allocation3], 1
    %39 = vsyncpa [#allocation4], 1

</llo_original>
